<compile_context>
chip_gen: v6e
topology: v6e:2x2x1
jax: 0.10.0
libtpu: 0.0.40
codegen_flags: <defaults>
</compile_context>

<pallas_src>
import jax
import jax.numpy as jnp
from jax.experimental import pallas as pl
from jax.experimental.pallas import tpu as pltpu


def _pick_block(seq_len, target):
    """Largest divisor of seq_len <= target that is a multiple of 8 (or == seq_len)."""
    ts = min(target, seq_len)
    while ts > 1 and (seq_len % ts != 0 or (ts % 8 != 0 and ts != seq_len)):
        ts -= 1
    return ts


def _dma_gather_rows(table_hbm, row_of, scratch, sems, n_rows, n_flight):
    """Gather table_hbm[row_of(t)] -> scratch[t] for t in [0, n_rows).

    Keeps up to `n_flight` single-row DMAs in flight (prime / steady / drain).
    `n_rows` and `n_flight` are Python ints; `row_of(t)` returns a traced int32.
    """
    nfl = min(n_flight, n_rows)

    def _start(t):
        slot = t % nfl
        pltpu.make_async_copy(
            table_hbm.at[pl.ds(row_of(t), 1), :],
            scratch.at[pl.ds(t, 1), :],
            sems.at[slot],
        ).start()

    def _wait(t):
        slot = t % nfl
        # Only the semaphore + byte count matter for the wait descriptor.
        pltpu.make_async_copy(
            table_hbm.at[pl.ds(0, 1), :],
            scratch.at[pl.ds(0, 1), :],
            sems.at[slot],
        ).wait()

    # Prime: issue the first nfl row DMAs.
    @pl.loop(0, nfl)
    def _prime(t):
        _start(t)

    # Steady state: wait for the oldest in-flight DMA, reuse its slot.
    if nfl < n_rows:
        @pl.loop(nfl, n_rows)
        def _steady(t):
            _wait(t - nfl)
            _start(t)

    # Drain the remaining in-flight DMAs.
    @pl.loop(n_rows - nfl, n_rows)
    def _drain(t):
        _wait(t)


def _make_arange_kernel(ts, n_flight):
    """position_ids is None: positions are contiguous -> auto-pipelined pos tile."""

    def kernel(ids_ref, word_hbm, pos_blk_ref, o_ref, w_scratch, w_sems):
        b = pl.program_id(0)
        sb = pl.program_id(1)
        base = sb * ts
        _dma_gather_rows(
            word_hbm, lambda t: ids_ref[b, base + t], w_scratch, w_sems, ts, n_flight
        )
        o_ref[...] = (w_scratch[...] + pos_blk_ref[...]).astype(o_ref.dtype)

    return kernel


def _make_gather_kernel(ts, n_flight):
    """Explicit position_ids: DMA-gather both word and position rows."""

    def kernel(ids_ref, posids_ref, word_hbm, pos_hbm, o_ref,
               w_scratch, p_scratch, w_sems, p_sems):
        b = pl.program_id(0)
        sb = pl.program_id(1)
        base = sb * ts
        # TODO(synk): the two gather streams run back-to-back; interleaving their
        # prime phases would hide a little more latency on the explicit-ids path.
        _dma_gather_rows(
            word_hbm, lambda t: ids_ref[b, base + t], w_scratch, w_sems, ts, n_flight
        )
        _dma_gather_rows(
            pos_hbm, lambda t: posids_ref[b, base + t], p_scratch, p_sems, ts, n_flight
        )
        o_ref[...] = (w_scratch[...] + p_scratch[...]).astype(o_ref.dtype)

    return kernel


def longformer_embeddings(input_ids, word_emb, pos_emb, position_ids=None,
                          *, block_tokens=256, dma_in_flight=8):
    """JAX wrapper reproducing LongformerEmbeddings.forward (eval mode)."""
    B, S = input_ids.shape
    V, D = word_emb.shape
    P, D2 = pos_emb.shape
    assert D == D2, "word/position embedding dims must match"

    input_ids = input_ids.astype(jnp.int32)

    ts = _pick_block(S, block_tokens)
    nfl = min(dma_in_flight, ts)
    num_sb = S // ts

    out_shape = jax.ShapeDtypeStruct((B, S, D), word_emb.dtype)
    compiler_params = pltpu.CompilerParams(
        dimension_semantics=("parallel", "parallel"),
        vmem_limit_bytes=48 * 1024 * 1024,  # fits v7x's 64 MiB VMEM with headroom
    )

    if position_ids is None:
        # Default path: position ids are arange(S) broadcast over batch, so the
        # (ts, D) position tile for block sb is a contiguous slice of pos_emb.
        assert S <= P, "sequence length exceeds max_position_embeddings"
        grid_spec = pltpu.PrefetchScalarGridSpec(
            num_scalar_prefetch=1,  # input_ids -> SMEM
            grid=(B, num_sb),
            in_specs=[
                pl.BlockSpec(memory_space=pl.ANY),                    # word_emb (HBM)
                pl.BlockSpec((ts, D), lambda b, sb, ids: (sb, 0)),    # contiguous pos tile
            ],
            out_specs=pl.BlockSpec((None, ts, D), lambda b, sb, ids: (b, sb, 0)),
            scratch_shapes=[
                pltpu.VMEM((ts, D), word_emb.dtype),   # gathered word rows
                pltpu.SemaphoreType.DMA((nfl,)),
            ],
        )
        return pl.pallas_call(
            _make_arange_kernel(ts, nfl),
            grid_spec=grid_spec,
            out_shape=out_shape,
            compiler_params=compiler_params,
        )(input_ids, word_emb, pos_emb)

    # Explicit position_ids: gather both tables by row.
    position_ids = position_ids.astype(jnp.int32)
    grid_spec = pltpu.PrefetchScalarGridSpec(
        num_scalar_prefetch=2,  # input_ids, position_ids -> SMEM
        grid=(B, num_sb),
        in_specs=[
            pl.BlockSpec(memory_space=pl.ANY),   # word_emb (HBM)
            pl.BlockSpec(memory_space=pl.ANY),   # pos_emb (HBM)
        ],
        out_specs=pl.BlockSpec((None, ts, D), lambda b, sb, ids, pids: (b, sb, 0)),
        scratch_shapes=[
            pltpu.VMEM((ts, D), word_emb.dtype),
            pltpu.VMEM((ts, D), pos_emb.dtype),
            pltpu.SemaphoreType.DMA((nfl,)),
            pltpu.SemaphoreType.DMA((nfl,)),
        ],
    )
    return pl.pallas_call(
        _make_gather_kernel(ts, nfl),
        grid_spec=grid_spec,
        out_shape=out_shape,
        compiler_params=compiler_params,
    )(input_ids, position_ids, word_emb, pos_emb)
    # TODO(synk): dropout (hidden_dropout_prob) is identity in eval mode; training-mode
    # dropout is intentionally not applied here.


if __name__ == "__main__":
    # Small config consistent with the module's __init__ (D kept a multiple of
    # 128 so output stores are lane-dense, per the perf review).
    vocab_size = 512
    model_dim = 128
    max_position_embeddings = 512
    pad_token_id = 1
    B, S = 2, 512

    key = jax.random.PRNGKey(0)
    k_w, k_p, k_ids, k_pos = jax.random.split(key, 4)

    # Deterministic parameter init (nn.Embedding ~ N(0,1); padding_idx row = 0).
    word_emb = jax.random.normal(k_w, (vocab_size, model_dim), dtype=jnp.float32)
    word_emb = word_emb.at[pad_token_id].set(0.0)
    pos_emb = jax.random.normal(
        k_p, (max_position_embeddings, model_dim), dtype=jnp.float32
    )

    input_ids = jax.random.randint(k_ids, (B, S), 0, vocab_size, dtype=jnp.int32)

    # Path 1: default position_ids (arange) -> contiguous, auto-pipelined pos tiles.
    out = jax.block_until_ready(longformer_embeddings(input_ids, word_emb, pos_emb))
    pos_ids_ref = jnp.broadcast_to(jnp.arange(S, dtype=jnp.int32)[None, :], (B, S))
    ref = word_emb[input_ids] + pos_emb[pos_ids_ref]
    assert out.shape == (B, S, model_dim)
    assert jnp.allclose(out, ref, atol=1e-6), "mismatch vs reference (default pos)"

    # Path 2: explicit position_ids -> in-kernel DMA gather for both tables.
    position_ids = jax.random.randint(
        k_pos, (B, S), 0, max_position_embeddings, dtype=jnp.int32
    )
    out2 = jax.block_until_ready(
        longformer_embeddings(input_ids, word_emb, pos_emb, position_ids)
    )
    ref2 = word_emb[input_ids] + pos_emb[position_ids]
    assert jnp.allclose(out2, ref2, atol=1e-6), "mismatch vs reference (explicit pos)"

    print("KERNEL_OK")
</pallas_src>

<mosaic_0001>
module attributes {stable_mosaic.version = 11 : i64} {
  func.func @kernel(%arg0: i32, %arg1: i32, %arg2: memref<2x512xi32, #tpu.memory_space<smem>>, %arg3: memref<512x128xf32, #tpu.memory_space<any>>, %arg4: memref<256x128xf32, #tpu.memory_space<vmem>>, %arg5: memref<1x256x128xf32, #tpu.memory_space<vmem>>, %arg6: memref<256x128xf32, #tpu.memory_space<vmem>>, %arg7: memref<8x!tpu.dma_semaphore, #tpu.memory_space<semaphore_mem>>) attributes {dimension_semantics = [#tpu.dimension_semantics<parallel>, #tpu.dimension_semantics<parallel>], iteration_bounds = array<i64: 2, 2>, scalar_prefetch = 1 : i64, scratch_operands = 2 : i64, tpu.core_type = #tpu.core_type<tc>, window_params = [{}, {transform_indices = @transform_1, window_bounds = array<i64: 256, 128>}, {transform_indices = @transform_2, window_bounds = array<i64: 1, 256, 128>}]} {
    %c256_i32 = arith.constant 256 : i32
    %0 = arith.muli %arg1, %c256_i32 : i32
    %c0_i32 = arith.constant 0 : i32
    %c8_i32 = arith.constant 8 : i32
    %1 = arith.addi %c0_i32, %c8_i32 : i32
    %c1_i32 = arith.constant 1 : i32
    scf.for %arg8 = %c0_i32 to %1 step %c1_i32  : i32 {
      %c1_i32_14 = arith.constant 1 : i32
      %10 = arith.muli %arg8, %c1_i32_14 : i32
      %c0_i32_15 = arith.constant 0 : i32
      %11 = arith.addi %c0_i32_15, %10 : i32
      %c8_i32_16 = arith.constant 8 : i32
      %c0_i32_17 = arith.constant 0 : i32
      %12 = arith.cmpi eq, %c8_i32_16, %c0_i32_17 : i32
      %c1_i32_18 = arith.constant 1 : i32
      %13 = arith.select %12, %c1_i32_18, %c8_i32_16 : i32
      %14 = arith.remsi %11, %13 : i32
      %c0_i32_19 = arith.constant 0 : i32
      %15 = arith.cmpi ne, %14, %c0_i32_19 : i32
      %c0_i32_20 = arith.constant 0 : i32
      %16 = arith.cmpi slt, %14, %c0_i32_20 : i32
      %c0_i32_21 = arith.constant 0 : i32
      %17 = arith.cmpi slt, %13, %c0_i32_21 : i32
      %18 = arith.xori %16, %17 : i1
      %19 = arith.andi %18, %15 : i1
      %20 = arith.addi %14, %13 : i32
      %21 = arith.select %19, %20, %14 : i32
      %22 = arith.addi %0, %11 : i32
      %23 = arith.index_cast %arg0 : i32 to index
      %24 = arith.index_cast %22 : i32 to index
      %25 = memref.load %arg2[%23, %24] : memref<2x512xi32, #tpu.memory_space<smem>>
      %c0_i32_22 = arith.constant 0 : i32
      %26 = tpu.memref_slice %arg3[%25, %c0_i32_22] : memref<512x128xf32, #tpu.memory_space<any>> -> memref<1x128xf32, #tpu.memory_space<any>>
      %c0_i32_23 = arith.constant 0 : i32
      %27 = tpu.memref_slice %arg6[%11, %c0_i32_23] : memref<256x128xf32, #tpu.memory_space<vmem>> -> memref<1x128xf32, #tpu.memory_space<vmem>>
      %28 = tpu.memref_slice %arg7[%21] : memref<8x!tpu.dma_semaphore, #tpu.memory_space<semaphore_mem>> -> memref<1x!tpu.dma_semaphore, #tpu.memory_space<semaphore_mem>>
      %29 = tpu.memref_squeeze %28 : memref<1x!tpu.dma_semaphore, #tpu.memory_space<semaphore_mem>> -> memref<!tpu.dma_semaphore, #tpu.memory_space<semaphore_mem>>
      tpu.enqueue_dma source(%26 : memref<1x128xf32, #tpu.memory_space<any>>) target(%27 : memref<1x128xf32, #tpu.memory_space<vmem>>) target_semaphore(%29 : memref<!tpu.dma_semaphore, #tpu.memory_space<semaphore_mem>>)
    }
    %c8_i32_0 = arith.constant 8 : i32
    %c0_i32_1 = arith.constant 0 : i32
    %c248_i32 = arith.constant 248 : i32
    %2 = arith.addi %c0_i32_1, %c248_i32 : i32
    %c1_i32_2 = arith.constant 1 : i32
    scf.for %arg8 = %c0_i32_1 to %2 step %c1_i32_2  : i32 {
      %c1_i32_14 = arith.constant 1 : i32
      %10 = arith.muli %arg8, %c1_i32_14 : i32
      %c8_i32_15 = arith.constant 8 : i32
      %11 = arith.addi %c8_i32_15, %10 : i32
      %c8_i32_16 = arith.constant 8 : i32
      %12 = arith.subi %11, %c8_i32_16 : i32
      %c8_i32_17 = arith.constant 8 : i32
      %c0_i32_18 = arith.constant 0 : i32
      %13 = arith.cmpi eq, %c8_i32_17, %c0_i32_18 : i32
      %c1_i32_19 = arith.constant 1 : i32
      %14 = arith.select %13, %c1_i32_19, %c8_i32_17 : i32
      %15 = arith.remsi %12, %14 : i32
      %c0_i32_20 = arith.constant 0 : i32
      %16 = arith.cmpi ne, %15, %c0_i32_20 : i32
      %c0_i32_21 = arith.constant 0 : i32
      %17 = arith.cmpi slt, %15, %c0_i32_21 : i32
      %c0_i32_22 = arith.constant 0 : i32
      %18 = arith.cmpi slt, %14, %c0_i32_22 : i32
      %19 = arith.xori %17, %18 : i1
      %20 = arith.andi %19, %16 : i1
      %21 = arith.addi %15, %14 : i32
      %22 = arith.select %20, %21, %15 : i32
      %c0_i32_23 = arith.constant 0 : i32
      %c0_i32_24 = arith.constant 0 : i32
      %23 = tpu.memref_slice %arg3[%c0_i32_23, %c0_i32_24] : memref<512x128xf32, #tpu.memory_space<any>> -> memref<1x128xf32, #tpu.memory_space<any>>
      %c0_i32_25 = arith.constant 0 : i32
      %c0_i32_26 = arith.constant 0 : i32
      %24 = tpu.memref_slice %arg6[%c0_i32_25, %c0_i32_26] : memref<256x128xf32, #tpu.memory_space<vmem>> -> memref<1x128xf32, #tpu.memory_space<vmem>>
      %25 = tpu.memref_slice %arg7[%22] : memref<8x!tpu.dma_semaphore, #tpu.memory_space<semaphore_mem>> -> memref<1x!tpu.dma_semaphore, #tpu.memory_space<semaphore_mem>>
      %26 = tpu.memref_squeeze %25 : memref<1x!tpu.dma_semaphore, #tpu.memory_space<semaphore_mem>> -> memref<!tpu.dma_semaphore, #tpu.memory_space<semaphore_mem>>
      tpu.wait_dma2 semaphore(%26 : memref<!tpu.dma_semaphore, #tpu.memory_space<semaphore_mem>>) src(%23 : memref<1x128xf32, #tpu.memory_space<any>>) dst(%24 : memref<1x128xf32, #tpu.memory_space<vmem>>)
      %c8_i32_27 = arith.constant 8 : i32
      %c0_i32_28 = arith.constant 0 : i32
      %27 = arith.cmpi eq, %c8_i32_27, %c0_i32_28 : i32
      %c1_i32_29 = arith.constant 1 : i32
      %28 = arith.select %27, %c1_i32_29, %c8_i32_27 : i32
      %29 = arith.remsi %11, %28 : i32
      %c0_i32_30 = arith.constant 0 : i32
      %30 = arith.cmpi ne, %29, %c0_i32_30 : i32
      %c0_i32_31 = arith.constant 0 : i32
      %31 = arith.cmpi slt, %29, %c0_i32_31 : i32
      %c0_i32_32 = arith.constant 0 : i32
      %32 = arith.cmpi slt, %28, %c0_i32_32 : i32
      %33 = arith.xori %31, %32 : i1
      %34 = arith.andi %33, %30 : i1
      %35 = arith.addi %29, %28 : i32
      %36 = arith.select %34, %35, %29 : i32
      %37 = arith.addi %0, %11 : i32
      %38 = arith.index_cast %arg0 : i32 to index
      %39 = arith.index_cast %37 : i32 to index
      %40 = memref.load %arg2[%38, %39] : memref<2x512xi32, #tpu.memory_space<smem>>
      %c0_i32_33 = arith.constant 0 : i32
      %41 = tpu.memref_slice %arg3[%40, %c0_i32_33] : memref<512x128xf32, #tpu.memory_space<any>> -> memref<1x128xf32, #tpu.memory_space<any>>
      %c0_i32_34 = arith.constant 0 : i32
      %42 = tpu.memref_slice %arg6[%11, %c0_i32_34] : memref<256x128xf32, #tpu.memory_space<vmem>> -> memref<1x128xf32, #tpu.memory_space<vmem>>
      %43 = tpu.memref_slice %arg7[%36] : memref<8x!tpu.dma_semaphore, #tpu.memory_space<semaphore_mem>> -> memref<1x!tpu.dma_semaphore, #tpu.memory_space<semaphore_mem>>
      %44 = tpu.memref_squeeze %43 : memref<1x!tpu.dma_semaphore, #tpu.memory_space<semaphore_mem>> -> memref<!tpu.dma_semaphore, #tpu.memory_space<semaphore_mem>>
      tpu.enqueue_dma source(%41 : memref<1x128xf32, #tpu.memory_space<any>>) target(%42 : memref<1x128xf32, #tpu.memory_space<vmem>>) target_semaphore(%44 : memref<!tpu.dma_semaphore, #tpu.memory_space<semaphore_mem>>)
    }
    %c248_i32_3 = arith.constant 248 : i32
    %c0_i32_4 = arith.constant 0 : i32
    %c8_i32_5 = arith.constant 8 : i32
    %3 = arith.addi %c0_i32_4, %c8_i32_5 : i32
    %c1_i32_6 = arith.constant 1 : i32
    scf.for %arg8 = %c0_i32_4 to %3 step %c1_i32_6  : i32 {
      %c1_i32_14 = arith.constant 1 : i32
      %10 = arith.muli %arg8, %c1_i32_14 : i32
      %c248_i32_15 = arith.constant 248 : i32
      %11 = arith.addi %c248_i32_15, %10 : i32
      %c8_i32_16 = arith.constant 8 : i32
      %c0_i32_17 = arith.constant 0 : i32
      %12 = arith.cmpi eq, %c8_i32_16, %c0_i32_17 : i32
      %c1_i32_18 = arith.constant 1 : i32
      %13 = arith.select %12, %c1_i32_18, %c8_i32_16 : i32
      %14 = arith.remsi %11, %13 : i32
      %c0_i32_19 = arith.constant 0 : i32
      %15 = arith.cmpi ne, %14, %c0_i32_19 : i32
      %c0_i32_20 = arith.constant 0 : i32
      %16 = arith.cmpi slt, %14, %c0_i32_20 : i32
      %c0_i32_21 = arith.constant 0 : i32
      %17 = arith.cmpi slt, %13, %c0_i32_21 : i32
      %18 = arith.xori %16, %17 : i1
      %19 = arith.andi %18, %15 : i1
      %20 = arith.addi %14, %13 : i32
      %21 = arith.select %19, %20, %14 : i32
      %c0_i32_22 = arith.constant 0 : i32
      %c0_i32_23 = arith.constant 0 : i32
      %22 = tpu.memref_slice %arg3[%c0_i32_22, %c0_i32_23] : memref<512x128xf32, #tpu.memory_space<any>> -> memref<1x128xf32, #tpu.memory_space<any>>
      %c0_i32_24 = arith.constant 0 : i32
      %c0_i32_25 = arith.constant 0 : i32
      %23 = tpu.memref_slice %arg6[%c0_i32_24, %c0_i32_25] : memref<256x128xf32, #tpu.memory_space<vmem>> -> memref<1x128xf32, #tpu.memory_space<vmem>>
      %24 = tpu.memref_slice %arg7[%21] : memref<8x!tpu.dma_semaphore, #tpu.memory_space<semaphore_mem>> -> memref<1x!tpu.dma_semaphore, #tpu.memory_space<semaphore_mem>>
      %25 = tpu.memref_squeeze %24 : memref<1x!tpu.dma_semaphore, #tpu.memory_space<semaphore_mem>> -> memref<!tpu.dma_semaphore, #tpu.memory_space<semaphore_mem>>
      tpu.wait_dma2 semaphore(%25 : memref<!tpu.dma_semaphore, #tpu.memory_space<semaphore_mem>>) src(%22 : memref<1x128xf32, #tpu.memory_space<any>>) dst(%23 : memref<1x128xf32, #tpu.memory_space<vmem>>)
    }
    %c8_i32_7 = arith.constant 8 : i32
    %c0 = arith.constant 0 : index
    %c0_8 = arith.constant 0 : index
    %4 = vector.load %arg6[%c0, %c0_8] : memref<256x128xf32, #tpu.memory_space<vmem>>, vector<256x128xf32>
    %c0_9 = arith.constant 0 : index
    %c0_10 = arith.constant 0 : index
    %5 = vector.load %arg4[%c0_9, %c0_10] : memref<256x128xf32, #tpu.memory_space<vmem>>, vector<256x128xf32>
    %6 = arith.addf %4, %5 : vector<256x128xf32>
    %c0_11 = arith.constant 0 : index
    %c0_12 = arith.constant 0 : index
    %c0_13 = arith.constant 0 : index
    %7 = vector.load %arg5[%c0_11, %c0_12, %c0_13] : memref<1x256x128xf32, #tpu.memory_space<vmem>>, vector<1x256x128xf32>
    %8 = vector.shape_cast %7 : vector<1x256x128xf32> to vector<256x128xf32>
    %9 = vector.shape_cast %6 : vector<256x128xf32> to vector<1x256x128xf32>
    tpu.vector_store %arg5[%c0_11, %c0_12, %c0_13], %9 {strides = array<i32>} : memref<1x256x128xf32, #tpu.memory_space<vmem>>, vector<1x256x128xf32>,
    return
  }
  func.func @transform_1(%arg0: i32, %arg1: i32, %arg2: memref<2x512xi32, #tpu.memory_space<smem>>) -> (i32, i32) {
    %c0_i32 = arith.constant 0 : i32
    %c0_i32_0 = arith.constant 0 : i32
    return %arg1, %c0_i32 : i32, i32
  }
  func.func @transform_2(%arg0: i32, %arg1: i32, %arg2: memref<2x512xi32, #tpu.memory_space<smem>>) -> (i32, i32, i32) {
    %c0_i32 = arith.constant 0 : i32
    %c0_i32_0 = arith.constant 0 : i32
    return %arg0, %arg1, %c0_i32 : i32, i32, i32
  }
}

</mosaic_0001>

<llo_original>
// kernel: tpu_custom_call.1
$region0: #{tpu_custom_call.1}
  #allocation0 [shape = 'u32[]', space=smem, size = 0x4, offset = 0x4, fixed_abs, tag = 'smem constant byte address 0x4 - core index']
  #allocation1 [shape = 'u32[144,128]{1,0:T(1,128)}', space=vmem, size = 0x12000, scoped, tag = 'internal scratch']
  #allocation2 [shape = 'f32[256,128]{1,0:T(8,128)}', space=vmem, size = 0x20000, scoped, tag = 'scratch operand']
  #allocation3 [shape = 's32[8]{0}', space=sflag, size = 0x20, scoped, tag = 'scratch operand']
  #allocation4 [shape = 's32[1]{0}', space=sflag, size = 0x4, scoped, tag = 'scoped memory for tpu_custom_call.1']
  #allocation5 [shape = 'u8[4096]{0}', space=smem, size = 0x1000, scoped, tag = 'prefetched SMEM operand 0']
  #allocation10 [shape = 's32[]', space=sflag, size = 0x4, offset = 0, fixed_abs, tag = 'sflag constant byte address 0x0 - dummy sync flag']
  #allocation11 [shape = 's32[]', space=sflag, size = 0x4, offset = 0, fixed_abs, tag = 'sflag constant byte address 0x0 - dummy sync flag']
  #allocation12 [shape = 'u32[]', space=smem, size = 0x4, offset = 0x44, fixed_abs, tag = 'smem constant byte address 0x44 - assertion arg 0']
  #allocation13 [shape = 'u32[]', space=smem, size = 0x4, offset = 0x48, fixed_abs, tag = 'smem constant byte address 0x48 - assertion arg 1']
  #allocation14 [shape = 's32[]', space=sflag, size = 0x4, offset = 0, fixed_abs, tag = 'sflag constant byte address 0x0 - dummy sync flag']
  #allocation15 [shape = 's32[]', space=sflag, size = 0x4, offset = 0, fixed_abs, tag = 'sflag constant byte address 0x0 - dummy sync flag']
  %s0 = inlined_call_operand.hbm [shape: s32[2,512], index: 0, kind: input, shape index: {}]
  %s1 = inlined_call_operand.hbm [shape: f32[512,128], index: 1, kind: input, shape index: {}]
  %s2 = inlined_call_operand.hbm [shape: f32[512,128], index: 2, kind: input, shape index: {}]
  %s3 = inlined_call_operand.hbm [shape: f32[2,512,128], index: 3, kind: output, shape index: {}]
  %s4 = sld [smem:[#allocation0]]
  $region70: #{tpu_custom_call.1} parent=0
    _
  %s6 = ssub.s32 1, %s4
  %s7 = scalar_select 0, %s6, %s4
  %9 = dma.hbm_to_smem %s0, 128, [#allocation5], [#allocation4]
  %10 = dma.done [#allocation4], 128
  %11 = sfence
  $region1: #{tpu_custom_call.1} parent=0
    #allocation6 [shape = 'u8[262144]{0}', space=vmem, size = 0x40000, scoped, tag = 'input window, operand 2']
    #allocation7 [shape = 's32[2]{0}', space=sflag, size = 0x8, scoped, tag = 'scoped memory for tpu_custom_call.1']
    #allocation8 [shape = 's32[2]{0}', space=sflag, size = 0x8, scoped, tag = 'scoped memory for tpu_custom_call.1']
    #allocation9 [shape = 'u8[262144]{0}', space=vmem, size = 0x40000, scoped, tag = 'output window, operand 0']
    %12 = vsyncpa [#allocation7], 0
    %s13 = scalar_lea.sflag [#allocation7], 1
    %14 = vsyncpa %s13, 0
    %15 = vsyncpa [#allocation8], 0
    %s16 = scalar_lea.sflag [#allocation8], 1
    %17 = vsyncpa %s16, 0
    loop: start=0, step=1, limit=6
    $region2: #{tpu_custom_call.1} parent=1 // loop_pre_header
      _
    $region3: #{tpu_custom_call.1} parent=1 // loop_header
      %s19 = sphi 0, %s23
      %p20 = scmp.ge.s32.totalorder %s19, 6
      %s26 = sphi 0, %s38
      %s27 = sphi 0, %s34
      %s28 = sphi 0, %s26
      %s29 = sphi 0, %s27
      %s30 = sphi 0, %s28
      %s31 = sphi 0, %s29
      %s41 = sphi 0, %s43
      %s44 = sphi 0, %s41
      %s45 = sphi 0, %s44
      %s61 = sphi 0, %s45
      %s69 = sphi 0, %s71
      %s72 = sphi 0, %s69
      %s73 = sphi 0, %s72
      %s89 = sphi 0, %s73
    $region4: #{tpu_custom_call.1} parent=1 // loop_header_branch
      %22 = sbr.rel (%p20) target = $region8
    $region5: #{tpu_custom_call.1} parent=1 // loop_body
      %s24 = ssub.s32 %s19, 1
      %s25 = ssub.s32 %s19, 2
      %s32 = sadd.s32 1, %s27
      %p33 = scmp.ge.s32.totalorder %s32, 2
      %s34 = scalar_select %p33, 0, %s32
      %s35 = sadd.s32 1, %s26
      %s36 = scalar_select %p33, %s35, %s26
      %p37 = scmp.ge.s32.totalorder %s36, 2
      %s38 = scalar_select %p37, 0, %s36
      %s39 = ssub.s32 %s27, %s34
      %p40 = scmp.eq.s32.totalorder %s39, 0
      %s42 = sadd.s32 %s41, 1
      %s43 = scalar_select %p40, %s41, %s42
      %p46 = pneg %p40
      %p47 = scmp.eq.s32.totalorder %s19, 3
      %p48 = por %p46, %p47
      %p49 = scmp.ne.s32.totalorder %s41, %s44
      %p50 = scmp.eq.s32.totalorder %s19, 0
      %p51 = por %p49, %p50
      %p52 = scmp.ne.s32.totalorder %s41, %s44
      %p53 = scmp.eq.s32.totalorder %s24, 3
      %p54 = por %p52, %p53
      %p55 = scmp.ne.s32.totalorder %s44, %s45
      %p56 = scmp.eq.s32.totalorder %s24, 0
      %p57 = por %p55, %p56
      %p58 = scmp.ne.s32.totalorder %s44, %s45
      %p59 = scmp.eq.s32.totalorder %s25, 3
      %p60 = por %p58, %p59
      %p62 = scmp.ne.s32.totalorder %s45, %s61
      %p63 = scmp.eq.s32.totalorder %s25, 0
      %p64 = por %p62, %p63
      %s65 = ssub.s32 %s26, %s38
      %s66 = ssub.s32 %s27, %s34
      %s67 = sor.u32 %s65, %s66
      %p68 = scmp.eq.s32.totalorder %s67, 0
      %s70 = sadd.s32 %s69, 1
      %s71 = scalar_select %p68, %s69, %s70
      %p74 = pneg %p68
      %p75 = scmp.eq.s32.totalorder %s19, 3
      %p76 = por %p74, %p75
      %p77 = scmp.ne.s32.totalorder %s69, %s72
      %p78 = scmp.eq.s32.totalorder %s19, 0
      %p79 = por %p77, %p78
      %p80 = scmp.ne.s32.totalorder %s69, %s72
      %p81 = scmp.eq.s32.totalorder %s24, 3
      %p82 = por %p80, %p81
      %p83 = scmp.ne.s32.totalorder %s72, %s73
      %p84 = scmp.eq.s32.totalorder %s24, 0
      %p85 = por %p83, %p84
      %p86 = scmp.ne.s32.totalorder %s72, %s73
      %p87 = scmp.eq.s32.totalorder %s25, 3
      %p88 = por %p86, %p87
      %p90 = scmp.ne.s32.totalorder %s73, %s89
      %p91 = scmp.eq.s32.totalorder %s25, 0
      %p92 = por %p90, %p91
      %p93 = scmp.le.s32.totalorder 1, %s19
      %p94 = scmp.lt.s32.totalorder %s19, 5
      %p95 = pnand %p93, %p94
      %p96 = pneg %p95
      // Predicated region
      $region9: #{tpu_custom_call.1} parent=5 // pred_check
        _
      $region10: #{tpu_custom_call.1} parent=5 // pred_check_branch
        %98 = sbr.rel (%p95) target = $region12
      $region11: #{tpu_custom_call.1} parent=5 // pred_region
        %s99 = ssub.s32 %s19, 1
      $region12: #{tpu_custom_call.1} parent=5 // pred_fallthru
        _
      %p100 = scmp.lt.s32.totalorder %s19, 4
      // Predicated region
      $region13: #{tpu_custom_call.1} parent=5 // pred_check
        %p101 = pneg %p100
      $region14: #{tpu_custom_call.1} parent=5 // pred_check_branch
        %103 = sbr.rel (%p101) target = $region16
      $region15: #{tpu_custom_call.1} parent=5 // pred_region
        // Predicated region
        $region17: #{tpu_custom_call.1} parent=15 // pred_check
          %p104 = pneg %p51
        $region18: #{tpu_custom_call.1} parent=15 // pred_check_branch
          %106 = sbr.rel (%p104) target = $region20
        $region19: #{tpu_custom_call.1} parent=15 // pred_region
          %s107 = sand.u32 %s41, 1
          %s108 = scalar_lea.sflag [#allocation7], %s107
          %s109 = sand.u32 %s41, 1
          %s110 = smul.addr %s109, 256
          %s111 = scalar_lea.vmem [#allocation6], %s110
          %s112 = smul.u32 32, %s27
          %s114 = ssub.s32 4096, 4096
          %115 = vsyncadd %s108, %s114
          %s116 = smul.addr %s112, 128
          %s117 = scalar_lea.hbm %s2, %s116
          %s118 = sshll.u32 %s111, 4
          %s119 = int_to_ptr.vmem [resolvable:$true] %s118
          %124 = dma.hbm_to_vmem [thread:$0]  %s117, 4096, %s119, %s108, 128, 128, 8
        $region20: #{tpu_custom_call.1} parent=15 // pred_fallthru
          _
      $region16: #{tpu_custom_call.1} parent=5 // pred_fallthru
        _
      %p125 = scmp.le.s32.totalorder 1, %s19
      %p126 = scmp.lt.s32.totalorder %s19, 5
      %p127 = pnand %p125, %p126
      %p128 = pneg %p127
      // Predicated region
      $region21: #{tpu_custom_call.1} parent=5 // pred_check
        _
      $region22: #{tpu_custom_call.1} parent=5 // pred_check_branch
        %130 = sbr.rel (%p127) target = $region24
      $region23: #{tpu_custom_call.1} parent=5 // pred_region
        %s131 = ssub.s32 %s19, 1
        %s132 = sand.u32 %s44, 1
        %s133 = scalar_lea.sflag [#allocation7], %s132
        %s134 = sand.u32 %s44, 1
        %s135 = smul.addr %s134, 256
        %s136 = scalar_lea.vmem [#allocation6], %s135
        // Predicated region
        $region25: #{tpu_custom_call.1} parent=23 // pred_check
          %p137 = pneg %p57
        $region26: #{tpu_custom_call.1} parent=23 // pred_check_branch
          %139 = sbr.rel (%p137) target = $region28
        $region27: #{tpu_custom_call.1} parent=23 // pred_region
          %140 = dma.done %s133, 4096
        $region28: #{tpu_custom_call.1} parent=23 // pred_fallthru
          _
        %s141 = sand.u32 %s44, 1
        %s142 = scalar_lea.sflag [#allocation7], %s141
        %s143 = sand.u32 %s44, 1
        %s144 = smul.addr %s143, 256
        %s145 = scalar_lea.vmem [#allocation6], %s144
        %p146 = pneg %p57
        %p147 = pneg %p54
        %p148 = pneg %p85
        %p149 = pneg %p82
        %s150 = sand.u32 %s72, 1
        %s151 = scalar_lea.sflag [#allocation8], %s150
        %s152 = sand.u32 %s72, 1
        %s153 = smul.addr %s152, 256
        %s154 = scalar_lea.vmem [#allocation9], %s153
        %s155 = smul.u32 32, %s29
        %s156 = smul.u32 32, %s29
        %s157 = smul.u32 %s29, 256
        loop: start=0, step=1, limit=8
        $region29: #{tpu_custom_call.1} parent=23 // loop_pre_header
          _
        $region30: #{tpu_custom_call.1} parent=23 // loop_header
          %s159 = sphi 0, %s163
          %p160 = scmp.ge.s32.totalorder %s159, 8
        $region31: #{tpu_custom_call.1} parent=23 // loop_header_branch
          %162 = sbr.rel (%p160) target = $region35
        $region32: #{tpu_custom_call.1} parent=23 // loop_body
          %p164 = scmp.lt.s32.totalorder %s159, 0
          %s165 = ssub.s32 0, %s159
          %s166 = scalar_select %p164, %s165, %s159
          %s167 = sand.u32 %s166, 7
          %s168 = ssub.s32 0, %s167
          %s169 = scalar_select %p164, %s168, %s167
          %p170 = scmp.ne.s32.totalorder %s169, 0
          %p171 = scmp.lt.s32.totalorder %s169, 0
          %p172 = pnand %p171, %p170
          %p173 = pneg %p172
          %s174 = sadd.s32 %s169, 8
          %s175 = scalar_select %p173, %s174, %s169
          %s176 = sadd.s32 %s157, %s159
          %s177 = sshra.s32 %s176, 7
          %s178 = sand.u32 %s176, 127
          %s179 = sshra.s32 %s28, 1
          %s180 = sand.u32 %s28, 1
          %s181 = smul.u32 %s179, 4
          %s182 = sadd.s32 %s177, %s181
          %s183 = smul.u32 %s182, 256
          %s184 = sshra.s32 %s28, 1
          %s185 = sand.u32 %s28, 1
          %s186 = sshra.s32 %s176, 7
          %s187 = sand.u32 %s176, 127
          %s188 = smul.u32 %s185, 128
          %s189 = sadd.s32 %s188, %s187
          %s190 = sadd.s32 %s183, %s189
          %s191 = sld [smem:[#allocation5 + %s190]]
          %s192 = smul.addr %s191, 16
          %s193 = scalar_lea.hbm %s1, %s192
          %s194 = scalar_lea.vmem [#allocation2], %s159
          %s195 = scalar_lea.sflag [#allocation3], %s175
          // Predicated region
          $region36: #{tpu_custom_call.1} parent=32 // pred_check
            _
          $region37: #{tpu_custom_call.1} parent=32 // pred_check_branch
            %197 = sbr.rel target = $region39
          $region38: #{tpu_custom_call.1} parent=32 // pred_region
            %198 = sst [smem:[#allocation12]] [#allocation11]
            %199 = sst [smem:[#allocation13]] [#allocation10]
          $region39: #{tpu_custom_call.1} parent=32 // pred_fallthru
            _
          %201 = shalt.err (0)
          %s203 = sshll.u32 %s194, 4
          %s204 = int_to_ptr.vmem [resolvable:$true] %s203
          %206 = dma.hbm_to_vmem [thread:$0]  %s193, 16, %s204, %s195
        $region33: #{tpu_custom_call.1} parent=23 // loop_footer
          %s163 = sadd.s32 1, %s159
        $region34: #{tpu_custom_call.1} parent=23 // loop_footer_branch
          %158 = sbr.rel target = $region30
        $region35: #{tpu_custom_call.1} parent=23 // loop_exit
          _
        loop: start=0, step=1, limit=248
        $region40: #{tpu_custom_call.1} parent=23 // loop_pre_header
          _
        $region41: #{tpu_custom_call.1} parent=23 // loop_header
          %s208 = sphi 0, %s212
          %p209 = scmp.ge.s32.totalorder %s208, 248
        $region42: #{tpu_custom_call.1} parent=23 // loop_header_branch
          %211 = sbr.rel (%p209) target = $region46
        $region43: #{tpu_custom_call.1} parent=23 // loop_body
          %s213 = sadd.s32 %s208, 8
          %p214 = scmp.lt.s32.totalorder %s208, 0
          %s215 = ssub.s32 0, %s208
          %s216 = scalar_select %p214, %s215, %s208
          %s217 = sand.u32 %s216, 7
          %s218 = ssub.s32 0, %s217
          %s219 = scalar_select %p214, %s218, %s217
          %p220 = scmp.ne.s32.totalorder %s219, 0
          %p221 = scmp.lt.s32.totalorder %s219, 0
          %p222 = pnand %p221, %p220
          %p223 = pneg %p222
          %s224 = sadd.s32 %s219, 8
          %s225 = scalar_select %p223, %s224, %s219
          %s226 = scalar_lea.sflag [#allocation3], %s225
          %s227 = smul.u32 1, 1
          %s228 = sshll.u32 %s227, 4
          %229 = dma.done %s226, %s228
          %p230 = scmp.lt.s32.totalorder %s213, 0
          %s231 = ssub.s32 0, %s213
          %s232 = scalar_select %p230, %s231, %s213
          %s233 = sand.u32 %s232, 7
          %s234 = ssub.s32 0, %s233
          %s235 = scalar_select %p230, %s234, %s233
          %p236 = scmp.ne.s32.totalorder %s235, 0
          %p237 = scmp.lt.s32.totalorder %s235, 0
          %p238 = pnand %p237, %p236
          %p239 = pneg %p238
          %s240 = sadd.s32 %s235, 8
          %s241 = scalar_select %p239, %s240, %s235
          %s242 = sadd.s32 %s157, %s213
          %s243 = sshra.s32 %s242, 7
          %s244 = sand.u32 %s242, 127
          %s245 = sshra.s32 %s28, 1
          %s246 = sand.u32 %s28, 1
          %s247 = smul.u32 %s245, 4
          %s248 = sadd.s32 %s243, %s247
          %s249 = smul.u32 %s248, 256
          %s250 = sshra.s32 %s28, 1
          %s251 = sand.u32 %s28, 1
          %s252 = sshra.s32 %s242, 7
          %s253 = sand.u32 %s242, 127
          %s254 = smul.u32 %s251, 128
          %s255 = sadd.s32 %s254, %s253
          %s256 = sadd.s32 %s249, %s255
          %s257 = sld [smem:[#allocation5 + %s256]]
          %s258 = smul.addr %s257, 16
          %s259 = scalar_lea.hbm %s1, %s258
          %s260 = scalar_lea.vmem [#allocation2], %s213
          %s261 = scalar_lea.sflag [#allocation3], %s241
          // Predicated region
          $region47: #{tpu_custom_call.1} parent=43 // pred_check
            _
          $region48: #{tpu_custom_call.1} parent=43 // pred_check_branch
            %263 = sbr.rel target = $region50
          $region49: #{tpu_custom_call.1} parent=43 // pred_region
            %264 = sst [smem:[#allocation12]] [#allocation15]
            %265 = sst [smem:[#allocation13]] [#allocation14]
          $region50: #{tpu_custom_call.1} parent=43 // pred_fallthru
            _
          %267 = shalt.err (0)
          %s269 = sshll.u32 %s260, 4
          %s270 = int_to_ptr.vmem [resolvable:$true] %s269
          %272 = dma.hbm_to_vmem [thread:$0]  %s259, 16, %s270, %s261
        $region44: #{tpu_custom_call.1} parent=23 // loop_footer
          %s212 = sadd.s32 1, %s208
        $region45: #{tpu_custom_call.1} parent=23 // loop_footer_branch
          %207 = sbr.rel target = $region41
        $region46: #{tpu_custom_call.1} parent=23 // loop_exit
          _
        loop: start=0, step=1, limit=8
        $region51: #{tpu_custom_call.1} parent=23 // loop_pre_header
          _
        $region52: #{tpu_custom_call.1} parent=23 // loop_header
          %s274 = sphi 0, %s278
          %p275 = scmp.ge.s32.totalorder %s274, 8
        $region53: #{tpu_custom_call.1} parent=23 // loop_header_branch
          %277 = sbr.rel (%p275) target = $region57
        $region54: #{tpu_custom_call.1} parent=23 // loop_body
          %s279 = sadd.s32 %s274, 248
          %p280 = scmp.lt.s32.totalorder %s279, 0
          %s281 = ssub.s32 0, %s279
          %s282 = scalar_select %p280, %s281, %s279
          %s283 = sand.u32 %s282, 7
          %s284 = ssub.s32 0, %s283
          %s285 = scalar_select %p280, %s284, %s283
          %p286 = scmp.ne.s32.totalorder %s285, 0
          %p287 = scmp.lt.s32.totalorder %s285, 0
          %p288 = pnand %p287, %p286
          %p289 = pneg %p288
          %s290 = sadd.s32 %s285, 8
          %s291 = scalar_select %p289, %s290, %s285
          %s292 = scalar_lea.sflag [#allocation3], %s291
          %s293 = smul.u32 1, 1
          %s294 = sshll.u32 %s293, 4
          %295 = dma.done %s292, %s294
        $region55: #{tpu_custom_call.1} parent=23 // loop_footer
          %s278 = sadd.s32 1, %s274
        $region56: #{tpu_custom_call.1} parent=23 // loop_footer_branch
          %273 = sbr.rel target = $region52
        $region57: #{tpu_custom_call.1} parent=23 // loop_exit
          _
        %v296 = vld [vmem:[#allocation2] sm:$0xff]
        %v297 = vld [vmem:[#allocation2 + $0x8] sm:$0xff]
        %v298 = vld [vmem:[#allocation2 + $0x10] sm:$0xff]
        %v299 = vld [vmem:[#allocation2 + $0x18] sm:$0xff]
        %v300 = vld [vmem:[#allocation2 + $0x20] sm:$0xff]
        %v301 = vld [vmem:[#allocation2 + $0x28] sm:$0xff]
        %v302 = vld [vmem:[#allocation2 + $0x30] sm:$0xff]
        %v303 = vld [vmem:[#allocation2 + $0x38] sm:$0xff]
        %v304 = vld [vmem:[#allocation2 + $0x40] sm:$0xff]
        %v305 = vld [vmem:[#allocation2 + $0x48] sm:$0xff]
        %v306 = vld [vmem:[#allocation2 + $0x50] sm:$0xff]
        %v307 = vld [vmem:[#allocation2 + $0x58] sm:$0xff]
        %v308 = vld [vmem:[#allocation2 + $0x60] sm:$0xff]
        %v309 = vld [vmem:[#allocation2 + $0x68] sm:$0xff]
        %v310 = vld [vmem:[#allocation2 + $0x70] sm:$0xff]
        %v311 = vld [vmem:[#allocation2 + $0x78] sm:$0xff]
        %v312 = vld [vmem:[#allocation2 + $0x80] sm:$0xff]
        %v313 = vld [vmem:[#allocation2 + $0x88] sm:$0xff]
        %v314 = vld [vmem:[#allocation2 + $0x90] sm:$0xff]
        %v315 = vld [vmem:[#allocation2 + $0x98] sm:$0xff]
        %v316 = vld [vmem:[#allocation2 + $0xa0] sm:$0xff]
        %v317 = vld [vmem:[#allocation2 + $0xa8] sm:$0xff]
        %v318 = vld [vmem:[#allocation2 + $0xb0] sm:$0xff]
        %v319 = vld [vmem:[#allocation2 + $0xb8] sm:$0xff]
        %v320 = vld [vmem:[#allocation2 + $0xc0] sm:$0xff]
        %v321 = vld [vmem:[#allocation2 + $0xc8] sm:$0xff]
        %v322 = vld [vmem:[#allocation2 + $0xd0] sm:$0xff]
        %v323 = vld [vmem:[#allocation2 + $0xd8] sm:$0xff]
        %v324 = vld [vmem:[#allocation2 + $0xe0] sm:$0xff]
        %v325 = vld [vmem:[#allocation2 + $0xe8] sm:$0xff]
        %v326 = vld [vmem:[#allocation2 + $0xf0] sm:$0xff]
        %v327 = vld [vmem:[#allocation2 + $0xf8] sm:$0xff]
        %v328 = vld [vmem:[%s136] sm:$0xff]
        %v329 = vld [vmem:[%s136 + $0x8] sm:$0xff]
        %v330 = vld [vmem:[%s136 + $0x10] sm:$0xff]
        %v331 = vld [vmem:[%s136 + $0x18] sm:$0xff]
        %v332 = vld [vmem:[%s136 + $0x20] sm:$0xff]
        %v333 = vld [vmem:[%s136 + $0x28] sm:$0xff]
        %v334 = vld [vmem:[%s136 + $0x30] sm:$0xff]
        %v335 = vld [vmem:[%s136 + $0x38] sm:$0xff]
        %v336 = vld [vmem:[%s136 + $0x40] sm:$0xff]
        %v337 = vld [vmem:[%s136 + $0x48] sm:$0xff]
        %v338 = vld [vmem:[%s136 + $0x50] sm:$0xff]
        %v339 = vld [vmem:[%s136 + $0x58] sm:$0xff]
        %v340 = vld [vmem:[%s136 + $0x60] sm:$0xff]
        %v341 = vld [vmem:[%s136 + $0x68] sm:$0xff]
        %v342 = vld [vmem:[%s136 + $0x70] sm:$0xff]
        %v343 = vld [vmem:[%s136 + $0x78] sm:$0xff]
        %v344 = vld [vmem:[%s136 + $0x80] sm:$0xff]
        %v345 = vld [vmem:[%s136 + $0x88] sm:$0xff]
        %v346 = vld [vmem:[%s136 + $0x90] sm:$0xff]
        %v347 = vld [vmem:[%s136 + $0x98] sm:$0xff]
        %v348 = vld [vmem:[%s136 + $0xa0] sm:$0xff]
        %v349 = vld [vmem:[%s136 + $0xa8] sm:$0xff]
        %v350 = vld [vmem:[%s136 + $0xb0] sm:$0xff]
        %v351 = vld [vmem:[%s136 + $0xb8] sm:$0xff]
        %v352 = vld [vmem:[%s136 + $0xc0] sm:$0xff]
        %v353 = vld [vmem:[%s136 + $0xc8] sm:$0xff]
        %v354 = vld [vmem:[%s136 + $0xd0] sm:$0xff]
        %v355 = vld [vmem:[%s136 + $0xd8] sm:$0xff]
        %v356 = vld [vmem:[%s136 + $0xe0] sm:$0xff]
        %v357 = vld [vmem:[%s136 + $0xe8] sm:$0xff]
        %v358 = vld [vmem:[%s136 + $0xf0] sm:$0xff]
        %v359 = vld [vmem:[%s136 + $0xf8] sm:$0xff]
        %v360 = vadd.f32 %v296, %v328
        %v361 = vadd.f32 %v297, %v329
        %v362 = vadd.f32 %v298, %v330
        %v363 = vadd.f32 %v299, %v331
        %v364 = vadd.f32 %v300, %v332
        %v365 = vadd.f32 %v301, %v333
        %v366 = vadd.f32 %v302, %v334
        %v367 = vadd.f32 %v303, %v335
        %v368 = vadd.f32 %v304, %v336
        %v369 = vadd.f32 %v305, %v337
        %v370 = vadd.f32 %v306, %v338
        %v371 = vadd.f32 %v307, %v339
        %v372 = vadd.f32 %v308, %v340
        %v373 = vadd.f32 %v309, %v341
        %v374 = vadd.f32 %v310, %v342
        %v375 = vadd.f32 %v311, %v343
        %v376 = vadd.f32 %v312, %v344
        %v377 = vadd.f32 %v313, %v345
        %v378 = vadd.f32 %v314, %v346
        %v379 = vadd.f32 %v315, %v347
        %v380 = vadd.f32 %v316, %v348
        %v381 = vadd.f32 %v317, %v349
        %v382 = vadd.f32 %v318, %v350
        %v383 = vadd.f32 %v319, %v351
        %v384 = vadd.f32 %v320, %v352
        %v385 = vadd.f32 %v321, %v353
        %v386 = vadd.f32 %v322, %v354
        %v387 = vadd.f32 %v323, %v355
        %v388 = vadd.f32 %v324, %v356
        %v389 = vadd.f32 %v325, %v357
        %v390 = vadd.f32 %v326, %v358
        %v391 = vadd.f32 %v327, %v359
        %392 = vst [vmem:[%s154] sm:$0xff] %v360
        %393 = vst [vmem:[%s154 + $0x8] sm:$0xff] %v361
        %394 = vst [vmem:[%s154 + $0x10] sm:$0xff] %v362
        %395 = vst [vmem:[%s154 + $0x18] sm:$0xff] %v363
        %396 = vst [vmem:[%s154 + $0x20] sm:$0xff] %v364
        %397 = vst [vmem:[%s154 + $0x28] sm:$0xff] %v365
        %398 = vst [vmem:[%s154 + $0x30] sm:$0xff] %v366
        %399 = vst [vmem:[%s154 + $0x38] sm:$0xff] %v367
        %400 = vst [vmem:[%s154 + $0x40] sm:$0xff] %v368
        %401 = vst [vmem:[%s154 + $0x48] sm:$0xff] %v369
        %402 = vst [vmem:[%s154 + $0x50] sm:$0xff] %v370
        %403 = vst [vmem:[%s154 + $0x58] sm:$0xff] %v371
        %404 = vst [vmem:[%s154 + $0x60] sm:$0xff] %v372
        %405 = vst [vmem:[%s154 + $0x68] sm:$0xff] %v373
        %406 = vst [vmem:[%s154 + $0x70] sm:$0xff] %v374
        %407 = vst [vmem:[%s154 + $0x78] sm:$0xff] %v375
        %408 = vst [vmem:[%s154 + $0x80] sm:$0xff] %v376
        %409 = vst [vmem:[%s154 + $0x88] sm:$0xff] %v377
        %410 = vst [vmem:[%s154 + $0x90] sm:$0xff] %v378
        %411 = vst [vmem:[%s154 + $0x98] sm:$0xff] %v379
        %412 = vst [vmem:[%s154 + $0xa0] sm:$0xff] %v380
        %413 = vst [vmem:[%s154 + $0xa8] sm:$0xff] %v381
        %414 = vst [vmem:[%s154 + $0xb0] sm:$0xff] %v382
        %415 = vst [vmem:[%s154 + $0xb8] sm:$0xff] %v383
        %416 = vst [vmem:[%s154 + $0xc0] sm:$0xff] %v384
        %417 = vst [vmem:[%s154 + $0xc8] sm:$0xff] %v385
        %418 = vst [vmem:[%s154 + $0xd0] sm:$0xff] %v386
        %419 = vst [vmem:[%s154 + $0xd8] sm:$0xff] %v387
        %420 = vst [vmem:[%s154 + $0xe0] sm:$0xff] %v388
        %421 = vst [vmem:[%s154 + $0xe8] sm:$0xff] %v389
        %422 = vst [vmem:[%s154 + $0xf0] sm:$0xff] %v390
        %423 = vst [vmem:[%s154 + $0xf8] sm:$0xff] %v391
        %s424 = sand.u32 %s72, 1
        %s425 = scalar_lea.sflag [#allocation8], %s424
        %s426 = sand.u32 %s72, 1
        %s427 = smul.addr %s426, 256
        %s428 = scalar_lea.vmem [#allocation9], %s427
        // Predicated region
        $region58: #{tpu_custom_call.1} parent=23 // pred_check
          %p429 = pneg %p82
        $region59: #{tpu_custom_call.1} parent=23 // pred_check_branch
          %431 = sbr.rel (%p429) target = $region61
        $region60: #{tpu_custom_call.1} parent=23 // pred_region
          %s432 = smul.u32 32, %s29
          %s434 = ssub.s32 4096, 4096
          %435 = vsyncadd %s425, %s434
          %s436 = smul.addr %s28, 64
          %s437 = sadd.s32 %s432, %s436
          %s438 = smul.addr %s437, 128
          %s439 = scalar_lea.hbm %s3, %s438
          %s440 = sshll.u32 %s428, 4
          %s441 = int_to_ptr.vmem [resolvable:$true] %s440
          %446 = dma.vmem_to_hbm [thread:$0]  %s441, 4096, %s439, %s425, 128, 128, 8
        $region61: #{tpu_custom_call.1} parent=23 // pred_fallthru
          _
      $region24: #{tpu_custom_call.1} parent=5 // pred_fallthru
        _
      %p447 = scmp.le.s32.totalorder 2, %s19
      // Predicated region
      $region62: #{tpu_custom_call.1} parent=5 // pred_check
        %p448 = pneg %p447
      $region63: #{tpu_custom_call.1} parent=5 // pred_check_branch
        %450 = sbr.rel (%p448) target = $region65
      $region64: #{tpu_custom_call.1} parent=5 // pred_region
        %s451 = ssub.s32 %s19, 2
        // Predicated region
        $region66: #{tpu_custom_call.1} parent=64 // pred_check
          %p452 = pneg %p88
        $region67: #{tpu_custom_call.1} parent=64 // pred_check_branch
          %454 = sbr.rel (%p452) target = $region69
        $region68: #{tpu_custom_call.1} parent=64 // pred_region
          %s455 = sand.u32 %s73, 1
          %s456 = scalar_lea.sflag [#allocation8], %s455
          %s457 = sand.u32 %s73, 1
          %s458 = smul.addr %s457, 256
          %s459 = scalar_lea.vmem [#allocation9], %s458
          %460 = dma.done %s456, 4096
        $region69: #{tpu_custom_call.1} parent=64 // pred_fallthru
          _
      $region65: #{tpu_custom_call.1} parent=5 // pred_fallthru
        _
    $region6: #{tpu_custom_call.1} parent=1 // loop_footer
      %s23 = sadd.s32 1, %s19
    $region7: #{tpu_custom_call.1} parent=1 // loop_footer_branch
      %18 = sbr.rel target = $region3
    $region8: #{tpu_custom_call.1} parent=1 // loop_exit
      _
    %461 = vsyncpa [#allocation7], 1
    %s462 = scalar_lea.sflag [#allocation7], 1
    %463 = vsyncpa %s462, 1
    %464 = vsyncpa [#allocation8], 1
    %s465 = scalar_lea.sflag [#allocation8], 1
    %466 = vsyncpa %s465, 1
  %467 = vsyncmov [#allocation3]
  %s468 = vpop.sfrf %467
  %p469 = scmp.eq.s32.totalorder %s468, 0
  %p470 = pneg %p469
  %472 = shalt.err (%p470)
  %s473 = scalar_lea.sflag [#allocation3], 1
  %474 = vsyncmov %s473
  %s475 = vpop.sfrf %474
  %p476 = scmp.eq.s32.totalorder %s475, 0
  %p477 = pneg %p476
  %479 = shalt.err (%p477)
  %s480 = scalar_lea.sflag [#allocation3], 2
  %481 = vsyncmov %s480
  %s482 = vpop.sfrf %481
  %p483 = scmp.eq.s32.totalorder %s482, 0
  %p484 = pneg %p483
  %486 = shalt.err (%p484)
  %s487 = scalar_lea.sflag [#allocation3], 3
  %488 = vsyncmov %s487
  %s489 = vpop.sfrf %488
  %p490 = scmp.eq.s32.totalorder %s489, 0
  %p491 = pneg %p490
  %493 = shalt.err (%p491)
  %s494 = scalar_lea.sflag [#allocation3], 4
  %495 = vsyncmov %s494
  %s496 = vpop.sfrf %495
  %p497 = scmp.eq.s32.totalorder %s496, 0
  %p498 = pneg %p497
  %500 = shalt.err (%p498)
  %s501 = scalar_lea.sflag [#allocation3], 5
  %502 = vsyncmov %s501
  %s503 = vpop.sfrf %502
  %p504 = scmp.eq.s32.totalorder %s503, 0
  %p505 = pneg %p504
  %507 = shalt.err (%p505)
  %s508 = scalar_lea.sflag [#allocation3], 6
  %509 = vsyncmov %s508
  %s510 = vpop.sfrf %509
  %p511 = scmp.eq.s32.totalorder %s510, 0
  %p512 = pneg %p511
  %514 = shalt.err (%p512)
  %s515 = scalar_lea.sflag [#allocation3], 7
  %516 = vsyncmov %s515
  %s517 = vpop.sfrf %516
  %p518 = scmp.eq.s32.totalorder %s517, 0
  %p519 = pneg %p518
  %521 = shalt.err (%p519)

</llo_original>
